<compile_context>
chip_gen: v7x
topology: tpu7x:2x2x1
jax: 0.10.0
libtpu: 0.0.40
codegen_flags: <defaults>
</compile_context>

<pallas_src>
import jax
import jax.numpy as jnp
import numpy as np
from jax.experimental import pallas as pl
from jax.experimental.pallas import tpu as pltpu

LN_EPS = 1e-5   # torch.nn.LayerNorm default eps
LANE = 128


def _round_up(x, m):
    return (x + m - 1) // m * m


def _choose_bt(B, V):
    """Batches per grid step: fill sublanes but keep >=2 batch blocks (v7x megacore)."""
    bt = 1
    while (B % (bt * 2) == 0) and (B // (bt * 2) >= 2) and (bt * V < 32):
        bt *= 2
    return bt


def _make_fused_kernel(Bt, F, resnet):
    inv_f = 1.0 / float(F)

    def kernel(vert_ref, ev_ref, evT_ref, mask_ref, bias_ref,
               wveT_ref, wev1T_ref, gamma_ref, beta_ref, lmask_ref,
               out_ref, vf_ref):
        l = pl.program_id(1)

        # Initialize the VMEM-resident vert_feat accumulator at the first layer.
        @pl.when(l == 0)
        def _():
            vf_ref[...] = vert_ref[...]

        wveT = wveT_ref[...]      # (Fp, Fp)
        wev1T = wev1T_ref[...]    # (Fp, Fp)
        gamma = gamma_ref[...]    # (1, Fp)   zero in padded lanes
        beta = beta_ref[...]      # (1, Fp)   zero in padded lanes
        lmask = lmask_ref[...]    # (1, Fp)   1.0 for real lanes, 0.0 for padding

        for b in range(Bt):       # static unroll over batch items in this block
            v = vf_ref[b]                                                       # (V, Fp)

            # gl_ve: edge_feat = relu(edge_vert @ (vert_feat @ W_ve^T))
            h_v = jnp.dot(v, wveT, preferred_element_type=jnp.float32)          # (V, Fp)
            e = jnp.maximum(
                jnp.dot(ev_ref[b], h_v, preferred_element_type=jnp.float32), 0.0)  # (E, Fp)

            # gl_ev on concat([edge_feat, edge_feat_in]) == split matmul; the
            # edge_feat_in part was precomputed per layer in XLA (bias_ref).
            h_e = (jnp.dot(e, wev1T, preferred_element_type=jnp.float32)
                   + bias_ref[b])                                               # (E, Fp)

            # vert_feat_next = relu(edge_vert^T @ h_e) — pre-transposed adjacency.
            vn = jnp.maximum(
                jnp.dot(evT_ref[b], h_e, preferred_element_type=jnp.float32), 0.0)  # (V, Fp)

            # MaskedLayerNorm1d over the REAL F lanes (padded lanes are zero).
            mu = jnp.sum(vn, axis=-1, keepdims=True) * inv_f                    # (V, 1)
            ctr = (vn - mu) * lmask                                             # zero pad lanes
            var = jnp.sum(ctr * ctr, axis=-1, keepdims=True) * inv_f
            y = ctr * jax.lax.rsqrt(var + LN_EPS)
            y = y * gamma + beta
            y = y * mask_ref[b]                                                 # (V, 1) vertex mask

            if resnet:
                y = y + v
            vf_ref[b] = y

        # Emit the output only after the last layer for this batch block.
        @pl.when(l == pl.num_programs(1) - 1)
        def _():
            out_ref[...] = vf_ref[...]

    return kernel


def ve_layers_fused(vert_feat_p, ev, evT, mask3, bias_stack,
                    wveT_stack, wev1T_stack, gamma_stack, beta_stack, lane_mask,
                    *, F, resnet, Bt=None):
    B, V, Fp = vert_feat_p.shape
    E = ev.shape[1]
    L = wveT_stack.shape[0]
    if Bt is None or B % Bt != 0:
        Bt = _choose_bt(B, V)
    nb = B // Bt

    kernel = _make_fused_kernel(Bt, F, resnet)

    # Rough VMEM budget (double-buffered inputs + output + scratch), with headroom,
    # capped below v7x's 64 MiB physical VMEM.
    est_bytes = 4 * (Bt * V * Fp + Bt * E * max(V, LANE) + Bt * V * max(E, LANE)
                     + Bt * V * LANE + Bt * E * Fp + 2 * Fp * Fp + 3 * Fp)
    est_bytes = 2 * est_bytes + 3 * 4 * Bt * V * Fp
    vmem_limit = int(min(max(2 * est_bytes, 16 * 1024 * 1024), 48 * 1024 * 1024))

    return pl.pallas_call(
        kernel,
        out_shape=jax.ShapeDtypeStruct((B, V, Fp), jnp.float32),
        grid=(nb, L),
        in_specs=[
            pl.BlockSpec((Bt, V, Fp), lambda b, l: (b, 0, 0)),       # vert_feat (padded)
            pl.BlockSpec((Bt, E, V), lambda b, l: (b, 0, 0)),        # edge_vert (GS squeezed)
            pl.BlockSpec((Bt, V, E), lambda b, l: (b, 0, 0)),        # edge_vert^T
            pl.BlockSpec((Bt, V, 1), lambda b, l: (b, 0, 0)),        # vertex mask
            pl.BlockSpec((None, Bt, E, Fp), lambda b, l: (l, b, 0, 0)),  # per-layer efi @ W_ev2^T
            pl.BlockSpec((None, Fp, Fp), lambda b, l: (l, 0, 0)),    # W_ve^T     (layer l)
            pl.BlockSpec((None, Fp, Fp), lambda b, l: (l, 0, 0)),    # W_ev[:, :F]^T (layer l)
            pl.BlockSpec((None, 1, Fp), lambda b, l: (l, 0, 0)),     # LN gamma   (layer l)
            pl.BlockSpec((None, 1, Fp), lambda b, l: (l, 0, 0)),     # LN beta    (layer l)
            pl.BlockSpec((1, Fp), lambda b, l: (0, 0)),              # real-lane mask
        ],
        out_specs=pl.BlockSpec((Bt, V, Fp), lambda b, l: (b, 0, 0)),
        scratch_shapes=[pltpu.VMEM((Bt, V, Fp), jnp.float32)],
        compiler_params=pltpu.CompilerParams(
            dimension_semantics=("parallel", "arbitrary"),
            vmem_limit_bytes=vmem_limit,
        ),
    )(vert_feat_p, ev, evT, mask3, bias_stack,
      wveT_stack, wev1T_stack, gamma_stack, beta_stack, lane_mask)


class VELayersPallas:
    """JAX/Pallas port of VELayers (GS=1, GraphMatLayerFast, norm='layer')."""

    def __init__(self, input_feature_n, output_features_n, resnet=False,
                 *, key, init_scale=0.1):
        self.feature_n = output_features_n[-1]
        self.resnet = resnet
        F = self.feature_n
        self.w_ve, self.w_ev, self.gamma, self.beta = [], [], [], []
        for _ in range(len(output_features_n)):
            key, k1, k2 = jax.random.split(key, 3)
            # gl_ve: Linear(F -> F, bias=False);  gl_ev: Linear(F+4 -> F, bias=False)
            self.w_ve.append(init_scale * jax.random.normal(k1, (F, F), jnp.float32))
            self.w_ev.append(init_scale * jax.random.normal(k2, (F, F + 4), jnp.float32))
            self.gamma.append(jnp.ones((F,), jnp.float32))   # LayerNorm default init
            self.beta.append(jnp.zeros((F,), jnp.float32))

    def __call__(self, G, vert_feat_in, edge_edge, edge_vert, edge_feat_in,
                 input_mask):
        # G and edge_edge are unused by the reference forward.
        F = self.feature_n
        Fp = _round_up(max(F, LANE), LANE)      # lane-dense feature dim
        B, V, fin = vert_feat_in.shape
        L = len(self.w_ve)

        # Inputs (feature dim zero-padded to Fp).
        vert_feat = jnp.pad(vert_feat_in.astype(jnp.float32),
                            ((0, 0), (0, 0), (0, Fp - fin)))
        ev = edge_vert[:, 0].astype(jnp.float32)               # (B, E, V), GS == 1
        evT = jnp.transpose(ev, (0, 2, 1))                     # (B, V, E) pre-transposed
        efi = edge_feat_in.astype(jnp.float32)                 # (B, E, 4)
        mask3 = input_mask.astype(jnp.float32)[..., None]      # (B, V, 1)

        # Stacked, zero-padded per-layer parameters.
        w_ve = jnp.stack(self.w_ve)                            # (L, F, F)
        w_ev = jnp.stack(self.w_ev)                            # (L, F, F+4)
        wveT = jnp.zeros((L, Fp, Fp), jnp.float32).at[:, :F, :F].set(
            jnp.transpose(w_ve, (0, 2, 1)))
        wev1T = jnp.zeros((L, Fp, Fp), jnp.float32).at[:, :F, :F].set(
            jnp.transpose(w_ev[:, :, :F], (0, 2, 1)))
        gamma = jnp.zeros((L, 1, Fp), jnp.float32).at[:, 0, :F].set(jnp.stack(self.gamma))
        beta = jnp.zeros((L, 1, Fp), jnp.float32).at[:, 0, :F].set(jnp.stack(self.beta))

        # Layer-dependent but grid-invariant edge_feat_in projection, hoisted to XLA
        # (keeps the K=4 matmul off the MXU inside the fused kernel).
        w_ev2 = w_ev[:, :, F:]                                 # (L, F, 4)
        bias = jnp.einsum('bec,lfc->lbef', efi, w_ev2)         # (L, B, E, F)
        bias = jnp.pad(bias, ((0, 0), (0, 0), (0, 0), (0, Fp - F)))

        lane_mask = (jnp.arange(Fp) < F).astype(jnp.float32)[None, :]   # (1, Fp)

        out = ve_layers_fused(vert_feat, ev, evT, mask3, bias,
                              wveT, wev1T, gamma, beta, lane_mask,
                              F=F, resnet=self.resnet)
        return out[..., :F]

    # Pure-JAX reference (mirrors the PyTorch forward) for validation.
    def reference(self, G, vert_feat_in, edge_edge, edge_vert, edge_feat_in,
                  input_mask):
        F = self.feature_n
        pad = F - vert_feat_in.shape[-1]
        vert_feat = jnp.pad(vert_feat_in.astype(jnp.float32),
                            ((0, 0), (0, 0), (0, pad)))
        ev = edge_vert[:, 0].astype(jnp.float32)
        efi = edge_feat_in.astype(jnp.float32)
        mask = input_mask.astype(jnp.float32)
        for w_ve, w_ev, gamma, beta in zip(self.w_ve, self.w_ev,
                                           self.gamma, self.beta):
            h_v = jnp.einsum('bvf,gf->bvg', vert_feat, w_ve)
            e_feat = jax.nn.relu(jnp.einsum('bev,bvf->bef', ev, h_v))
            cat = jnp.concatenate([e_feat, efi], axis=-1)
            h_e = jnp.einsum('bec,fc->bef', cat, w_ev)
            vn = jax.nn.relu(jnp.einsum('bev,bef->bvf', ev, h_e))
            mu = jnp.mean(vn, axis=-1, keepdims=True)
            var = jnp.mean((vn - mu) ** 2, axis=-1, keepdims=True)
            y = (vn - mu) / jnp.sqrt(var + LN_EPS)
            y = y * gamma + beta
            y = y * mask[..., None]
            vert_feat = y + vert_feat if self.resnet else y
        return vert_feat


if __name__ == "__main__":
    key = jax.random.PRNGKey(0)
    B, V, E = 2, 8, 16
    in_feat = 7
    output_features_n = [32, 32]

    kp, k1, k2, k3, k4 = jax.random.split(key, 5)
    vert_feat_in = jax.random.normal(k1, (B, V, in_feat), jnp.float32)
    edge_vert = (jax.random.uniform(k2, (B, 1, E, V)) > 0.5).astype(jnp.float32)
    edge_feat_in = jax.random.normal(k3, (B, E, 4), jnp.float32)
    input_mask = (jax.random.uniform(k4, (B, V)) > 0.2).astype(jnp.float32)
    G = jnp.zeros((B, 1, V, V), jnp.float32)          # unused by forward
    edge_edge = jnp.zeros((B, 1, E, E), jnp.float32)  # unused by forward

    model = VELayersPallas(in_feat, output_features_n, resnet=True, key=kp)

    out = model(G, vert_feat_in, edge_edge, edge_vert, edge_feat_in, input_mask)
    out = jax.block_until_ready(out)

    ref = model.reference(G, vert_feat_in, edge_edge, edge_vert, edge_feat_in,
                          input_mask)
    np.testing.assert_allclose(np.asarray(out), np.asarray(ref),
                               rtol=1e-4, atol=1e-4)
    print("KERNEL_OK")
</pallas_src>

<mosaic_0001>
module attributes {stable_mosaic.version = 11 : i64} {
  func.func @kernel(%arg0: i32, %arg1: i32, %arg2: memref<1x8x128xf32, #tpu.memory_space<vmem>>, %arg3: memref<1x16x8xf32, #tpu.memory_space<vmem>>, %arg4: memref<1x8x16xf32, #tpu.memory_space<vmem>>, %arg5: memref<1x8x1xf32, #tpu.memory_space<vmem>>, %arg6: memref<1x1x16x128xf32, #tpu.memory_space<vmem>>, %arg7: memref<1x128x128xf32, #tpu.memory_space<vmem>>, %arg8: memref<1x128x128xf32, #tpu.memory_space<vmem>>, %arg9: memref<1x1x128xf32, #tpu.memory_space<vmem>>, %arg10: memref<1x1x128xf32, #tpu.memory_space<vmem>>, %arg11: memref<1x128xf32, #tpu.memory_space<vmem>>, %arg12: memref<1x8x128xf32, #tpu.memory_space<vmem>>, %arg13: memref<1x8x128xf32, #tpu.memory_space<vmem>>) attributes {dimension_semantics = [#tpu.dimension_semantics<parallel>, #tpu.dimension_semantics<arbitrary>], iteration_bounds = array<i64: 2, 2>, scalar_prefetch = 0 : i64, scratch_operands = 1 : i64, tpu.core_type = #tpu.core_type<tc>, window_params = [{transform_indices = @transform_0, window_bounds = array<i64: 1, 8, 128>}, {transform_indices = @transform_1, window_bounds = array<i64: 1, 16, 8>}, {transform_indices = @transform_2, window_bounds = array<i64: 1, 8, 16>}, {transform_indices = @transform_3, window_bounds = array<i64: 1, 8, 1>}, {transform_indices = @transform_4, window_bounds = array<i64: 1, 1, 16, 128>}, {transform_indices = @transform_5, window_bounds = array<i64: 1, 128, 128>}, {transform_indices = @transform_6, window_bounds = array<i64: 1, 128, 128>}, {transform_indices = @transform_7, window_bounds = array<i64: 1, 1, 128>}, {transform_indices = @transform_8, window_bounds = array<i64: 1, 1, 128>}, {pipeline_mode = #tpu.pipeline_mode<synchronous>, transform_indices = @transform_9, window_bounds = array<i64: 1, 128>}, {transform_indices = @transform_10, window_bounds = array<i64: 1, 8, 128>}]} {
    %c0_i32 = arith.constant 0 : i32
    %0 = arith.cmpi eq, %arg1, %c0_i32 : i32
    %1 = arith.extui %0 : i1 to i32
    %c0_i32_0 = arith.constant 0 : i32
    %2 = arith.cmpi ne, %1, %c0_i32_0 : i32
    scf.if %2 {
      %c0_44 = arith.constant 0 : index
      %c0_45 = arith.constant 0 : index
      %c0_46 = arith.constant 0 : index
      %62 = vector.load %arg2[%c0_44, %c0_45, %c0_46] : memref<1x8x128xf32, #tpu.memory_space<vmem>>, vector<1x8x128xf32>
      %c0_47 = arith.constant 0 : index
      %c0_48 = arith.constant 0 : index
      %c0_49 = arith.constant 0 : index
      %63 = vector.load %arg13[%c0_47, %c0_48, %c0_49] : memref<1x8x128xf32, #tpu.memory_space<vmem>>, vector<1x8x128xf32>
      tpu.vector_store %arg13[%c0_47, %c0_48, %c0_49], %62 {strides = array<i32>} : memref<1x8x128xf32, #tpu.memory_space<vmem>>, vector<1x8x128xf32>,
    } else {
    }
    %c0 = arith.constant 0 : index
    %c0_1 = arith.constant 0 : index
    %c0_2 = arith.constant 0 : index
    %3 = vector.load %arg7[%c0, %c0_1, %c0_2] : memref<1x128x128xf32, #tpu.memory_space<vmem>>, vector<1x128x128xf32>
    %4 = vector.shape_cast %3 : vector<1x128x128xf32> to vector<128x128xf32>
    %c0_3 = arith.constant 0 : index
    %c0_4 = arith.constant 0 : index
    %c0_5 = arith.constant 0 : index
    %5 = vector.load %arg8[%c0_3, %c0_4, %c0_5] : memref<1x128x128xf32, #tpu.memory_space<vmem>>, vector<1x128x128xf32>
    %6 = vector.shape_cast %5 : vector<1x128x128xf32> to vector<128x128xf32>
    %c0_6 = arith.constant 0 : index
    %c0_7 = arith.constant 0 : index
    %c0_8 = arith.constant 0 : index
    %7 = vector.load %arg9[%c0_6, %c0_7, %c0_8] : memref<1x1x128xf32, #tpu.memory_space<vmem>>, vector<1x1x128xf32>
    %8 = vector.shape_cast %7 : vector<1x1x128xf32> to vector<1x128xf32>
    %c0_9 = arith.constant 0 : index
    %c0_10 = arith.constant 0 : index
    %c0_11 = arith.constant 0 : index
    %9 = vector.load %arg10[%c0_9, %c0_10, %c0_11] : memref<1x1x128xf32, #tpu.memory_space<vmem>>, vector<1x1x128xf32>
    %10 = vector.shape_cast %9 : vector<1x1x128xf32> to vector<1x128xf32>
    %c0_12 = arith.constant 0 : index
    %c0_13 = arith.constant 0 : index
    %11 = vector.load %arg11[%c0_12, %c0_13] : memref<1x128xf32, #tpu.memory_space<vmem>>, vector<1x128xf32>
    %c0_14 = arith.constant 0 : index
    %c0_15 = arith.constant 0 : index
    %c0_16 = arith.constant 0 : index
    %12 = vector.load %arg13[%c0_14, %c0_15, %c0_16] : memref<1x8x128xf32, #tpu.memory_space<vmem>>, vector<1x8x128xf32>
    %13 = vector.shape_cast %12 : vector<1x8x128xf32> to vector<8x128xf32>
    %cst = arith.constant dense<0.000000e+00> : vector<8x128xf32>
    %14 = tpu.matmul %13, %4, %cst {dimension_numbers = #tpu.dot_dimension_numbers<[1], [0], [0], [1], [0, 0, 1, 1], [], []>} : vector<8x128xf32>, vector<128x128xf32>, vector<8x128xf32> -> vector<8x128xf32>
    %c0_17 = arith.constant 0 : index
    %c0_18 = arith.constant 0 : index
    %c0_19 = arith.constant 0 : index
    %15 = vector.load %arg3[%c0_17, %c0_18, %c0_19] : memref<1x16x8xf32, #tpu.memory_space<vmem>>, vector<1x16x8xf32>
    %16 = vector.shape_cast %15 : vector<1x16x8xf32> to vector<16x8xf32>
    %cst_20 = arith.constant dense<0.000000e+00> : vector<16x128xf32>
    %17 = tpu.matmul %16, %14, %cst_20 {dimension_numbers = #tpu.dot_dimension_numbers<[1], [0], [0], [1], [0, 0, 1, 1], [], []>} : vector<16x8xf32>, vector<8x128xf32>, vector<16x128xf32> -> vector<16x128xf32>
    %cst_21 = arith.constant 0.000000e+00 : f32
    %18 = vector.broadcast %cst_21 : f32 to vector<16x128xf32>
    %19 = arith.maximumf %17, %18 : vector<16x128xf32>
    %cst_22 = arith.constant dense<0.000000e+00> : vector<16x128xf32>
    %20 = tpu.matmul %19, %6, %cst_22 {dimension_numbers = #tpu.dot_dimension_numbers<[1], [0], [0], [1], [0, 0, 1, 1], [], []>} : vector<16x128xf32>, vector<128x128xf32>, vector<16x128xf32> -> vector<16x128xf32>
    %c0_23 = arith.constant 0 : index
    %c0_24 = arith.constant 0 : index
    %c0_25 = arith.constant 0 : index
    %c0_26 = arith.constant 0 : index
    %21 = vector.load %arg6[%c0_23, %c0_24, %c0_25, %c0_26] : memref<1x1x16x128xf32, #tpu.memory_space<vmem>>, vector<1x1x16x128xf32>
    %22 = vector.shape_cast %21 : vector<1x1x16x128xf32> to vector<16x128xf32>
    %23 = arith.addf %20, %22 : vector<16x128xf32>
    %c0_27 = arith.constant 0 : index
    %c0_28 = arith.constant 0 : index
    %c0_29 = arith.constant 0 : index
    %24 = vector.load %arg4[%c0_27, %c0_28, %c0_29] : memref<1x8x16xf32, #tpu.memory_space<vmem>>, vector<1x8x16xf32>
    %25 = vector.shape_cast %24 : vector<1x8x16xf32> to vector<8x16xf32>
    %cst_30 = arith.constant dense<0.000000e+00> : vector<8x128xf32>
    %26 = tpu.matmul %25, %23, %cst_30 {dimension_numbers = #tpu.dot_dimension_numbers<[1], [0], [0], [1], [0, 0, 1, 1], [], []>} : vector<8x16xf32>, vector<16x128xf32>, vector<8x128xf32> -> vector<8x128xf32>
    %cst_31 = arith.constant 0.000000e+00 : f32
    %27 = vector.broadcast %cst_31 : f32 to vector<8x128xf32>
    %28 = arith.maximumf %26, %27 : vector<8x128xf32>
    %cst_32 = arith.constant dense<0.000000e+00> : vector<8xf32>
    %29 = vector.multi_reduction <add>, %28, %cst_32 [1] : vector<8x128xf32> to vector<8xf32>
    %30 = vector.shape_cast %29 : vector<8xf32> to vector<8x1xf32>
    %cst_33 = arith.constant 3.125000e-02 : f32
    %31 = vector.broadcast %cst_33 : f32 to vector<8x1xf32>
    %32 = arith.mulf %30, %31 : vector<8x1xf32>
    %33 = vector.broadcast %32 : vector<8x1xf32> to vector<8x128xf32>
    %34 = arith.subf %28, %33 : vector<8x128xf32>
    %35 = vector.broadcast %11 : vector<1x128xf32> to vector<8x128xf32>
    %36 = arith.mulf %34, %35 : vector<8x128xf32>
    %37 = arith.mulf %36, %36 : vector<8x128xf32>
    %cst_34 = arith.constant dense<0.000000e+00> : vector<8xf32>
    %38 = vector.multi_reduction <add>, %37, %cst_34 [1] : vector<8x128xf32> to vector<8xf32>
    %39 = vector.shape_cast %38 : vector<8xf32> to vector<8x1xf32>
    %cst_35 = arith.constant 3.125000e-02 : f32
    %40 = vector.broadcast %cst_35 : f32 to vector<8x1xf32>
    %41 = arith.mulf %39, %40 : vector<8x1xf32>
    %cst_36 = arith.constant 9.99999974E-6 : f32
    %42 = vector.broadcast %cst_36 : f32 to vector<8x1xf32>
    %43 = arith.addf %41, %42 : vector<8x1xf32>
    %44 = math.rsqrt %43 : vector<8x1xf32>
    %45 = vector.broadcast %44 : vector<8x1xf32> to vector<8x128xf32>
    %46 = arith.mulf %36, %45 : vector<8x128xf32>
    %47 = vector.broadcast %8 : vector<1x128xf32> to vector<8x128xf32>
    %48 = arith.mulf %46, %47 : vector<8x128xf32>
    %49 = vector.broadcast %10 : vector<1x128xf32> to vector<8x128xf32>
    %50 = arith.addf %48, %49 : vector<8x128xf32>
    %c0_37 = arith.constant 0 : index
    %c0_38 = arith.constant 0 : index
    %c0_39 = arith.constant 0 : index
    %51 = vector.load %arg5[%c0_37, %c0_38, %c0_39] : memref<1x8x1xf32, #tpu.memory_space<vmem>>, vector<1x8x1xf32>
    %52 = vector.shape_cast %51 : vector<1x8x1xf32> to vector<8x1xf32>
    %53 = vector.broadcast %52 : vector<8x1xf32> to vector<8x128xf32>
    %54 = arith.mulf %50, %53 : vector<8x128xf32>
    %55 = arith.addf %54, %13 : vector<8x128xf32>
    %c0_40 = arith.constant 0 : index
    %c0_41 = arith.constant 0 : index
    %c0_42 = arith.constant 0 : index
    %56 = vector.load %arg13[%c0_40, %c0_41, %c0_42] : memref<1x8x128xf32, #tpu.memory_space<vmem>>, vector<1x8x128xf32>
    %57 = vector.shape_cast %56 : vector<1x8x128xf32> to vector<8x128xf32>
    %58 = vector.shape_cast %55 : vector<8x128xf32> to vector<1x8x128xf32>
    tpu.vector_store %arg13[%c0_40, %c0_41, %c0_42], %58 {strides = array<i32>} : memref<1x8x128xf32, #tpu.memory_space<vmem>>, vector<1x8x128xf32>,
    %c1_i32 = arith.constant 1 : i32
    %59 = arith.cmpi eq, %arg1, %c1_i32 : i32
    %60 = arith.extui %59 : i1 to i32
    %c0_i32_43 = arith.constant 0 : i32
    %61 = arith.cmpi ne, %60, %c0_i32_43 : i32
    scf.if %61 {
      %c0_44 = arith.constant 0 : index
      %c0_45 = arith.constant 0 : index
      %c0_46 = arith.constant 0 : index
      %62 = vector.load %arg13[%c0_44, %c0_45, %c0_46] : memref<1x8x128xf32, #tpu.memory_space<vmem>>, vector<1x8x128xf32>
      %c0_47 = arith.constant 0 : index
      %c0_48 = arith.constant 0 : index
      %c0_49 = arith.constant 0 : index
      %63 = vector.load %arg12[%c0_47, %c0_48, %c0_49] : memref<1x8x128xf32, #tpu.memory_space<vmem>>, vector<1x8x128xf32>
      tpu.vector_store %arg12[%c0_47, %c0_48, %c0_49], %62 {strides = array<i32>} : memref<1x8x128xf32, #tpu.memory_space<vmem>>, vector<1x8x128xf32>,
    } else {
    }
    return
  }
  func.func @transform_0(%arg0: i32, %arg1: i32) -> (i32, i32, i32) {
    %c0_i32 = arith.constant 0 : i32
    %c0_i32_0 = arith.constant 0 : i32
    %c0_i32_1 = arith.constant 0 : i32
    return %arg0, %c0_i32, %c0_i32_0 : i32, i32, i32
  }
  func.func @transform_1(%arg0: i32, %arg1: i32) -> (i32, i32, i32) {
    %c0_i32 = arith.constant 0 : i32
    %c0_i32_0 = arith.constant 0 : i32
    %c0_i32_1 = arith.constant 0 : i32
    return %arg0, %c0_i32, %c0_i32_0 : i32, i32, i32
  }
  func.func @transform_2(%arg0: i32, %arg1: i32) -> (i32, i32, i32) {
    %c0_i32 = arith.constant 0 : i32
    %c0_i32_0 = arith.constant 0 : i32
    %c0_i32_1 = arith.constant 0 : i32
    return %arg0, %c0_i32, %c0_i32_0 : i32, i32, i32
  }
  func.func @transform_3(%arg0: i32, %arg1: i32) -> (i32, i32, i32) {
    %c0_i32 = arith.constant 0 : i32
    %c0_i32_0 = arith.constant 0 : i32
    %c0_i32_1 = arith.constant 0 : i32
    return %arg0, %c0_i32, %c0_i32_0 : i32, i32, i32
  }
  func.func @transform_4(%arg0: i32, %arg1: i32) -> (i32, i32, i32, i32) {
    %c0_i32 = arith.constant 0 : i32
    %c0_i32_0 = arith.constant 0 : i32
    %c0_i32_1 = arith.constant 0 : i32
    return %arg1, %arg0, %c0_i32, %c0_i32_0 : i32, i32, i32, i32
  }
  func.func @transform_5(%arg0: i32, %arg1: i32) -> (i32, i32, i32) {
    %c0_i32 = arith.constant 0 : i32
    %c0_i32_0 = arith.constant 0 : i32
    %c0_i32_1 = arith.constant 0 : i32
    return %arg1, %c0_i32, %c0_i32_0 : i32, i32, i32
  }
  func.func @transform_6(%arg0: i32, %arg1: i32) -> (i32, i32, i32) {
    %c0_i32 = arith.constant 0 : i32
    %c0_i32_0 = arith.constant 0 : i32
    %c0_i32_1 = arith.constant 0 : i32
    return %arg1, %c0_i32, %c0_i32_0 : i32, i32, i32
  }
  func.func @transform_7(%arg0: i32, %arg1: i32) -> (i32, i32, i32) {
    %c0_i32 = arith.constant 0 : i32
    %c0_i32_0 = arith.constant 0 : i32
    %c0_i32_1 = arith.constant 0 : i32
    return %arg1, %c0_i32, %c0_i32_0 : i32, i32, i32
  }
  func.func @transform_8(%arg0: i32, %arg1: i32) -> (i32, i32, i32) {
    %c0_i32 = arith.constant 0 : i32
    %c0_i32_0 = arith.constant 0 : i32
    %c0_i32_1 = arith.constant 0 : i32
    return %arg1, %c0_i32, %c0_i32_0 : i32, i32, i32
  }
  func.func @transform_9(%arg0: i32, %arg1: i32) -> (i32, i32) {
    %c0_i32 = arith.constant 0 : i32
    %c0_i32_0 = arith.constant 0 : i32
    %c0_i32_1 = arith.constant 0 : i32
    return %c0_i32, %c0_i32_0 : i32, i32
  }
  func.func @transform_10(%arg0: i32, %arg1: i32) -> (i32, i32, i32) {
    %c0_i32 = arith.constant 0 : i32
    %c0_i32_0 = arith.constant 0 : i32
    %c0_i32_1 = arith.constant 0 : i32
    return %arg0, %c0_i32, %c0_i32_0 : i32, i32, i32
  }
}

</mosaic_0001>

<llo_original>
// kernel: tpu_custom_call.1
$region0: #{tpu_custom_call.1}
  #allocation0 [shape = 'u32[]', space=smem, size = 0x4, offset = 0x4, fixed_abs, tag = 'smem constant byte address 0x4 - core index']
  #allocation1 [shape = 'u32[144,128]{1,0:T(1,128)}', space=vmem, size = 0x12000, scoped, tag = 'internal scratch']
  #allocation2 [shape = 'f32[1,8,128]{2,1,0:T(8,128)}', space=vmem, size = 0x1000, scoped, tag = 'scratch operand']
  %s0 = inlined_call_operand.vmem [shape: f32[2,8,128], index: 0, kind: input, shape index: {}]
  %s1 = inlined_call_operand.vmem [shape: f32[2,16,8], index: 1, kind: input, shape index: {}]
  %s2 = inlined_call_operand.hbm [shape: f32[2,8,16], index: 2, kind: input, shape index: {}]
  %s3 = inlined_call_operand.vmem [shape: f32[2,8,1], index: 3, kind: input, shape index: {}]
  %s4 = inlined_call_operand.vmem [shape: f32[2,2,16,128], index: 4, kind: input, shape index: {}]
  %s5 = inlined_call_operand.hbm [shape: f32[2,128,128], index: 5, kind: input, shape index: {}]
  %s6 = inlined_call_operand.hbm [shape: f32[2,128,128], index: 6, kind: input, shape index: {}]
  %s7 = inlined_call_operand.vmem [shape: f32[2,1,128], index: 7, kind: input, shape index: {}]
  %s8 = inlined_call_operand.vmem [shape: f32[2,1,128], index: 8, kind: input, shape index: {}]
  %s9 = inlined_call_operand.vmem [shape: f32[1,128], index: 9, kind: input, shape index: {}]
  %s10 = inlined_call_operand.hbm [shape: f32[2,8,128], index: 10, kind: output, shape index: {}]
  %s11 = sld [smem:[#allocation0]]
  $region93: #{tpu_custom_call.1} parent=0
    _
  %s13 = ssub.s32 1, %s11
  %s14 = scalar_select 0, %s13, %s11
  $region1: #{tpu_custom_call.1} parent=0
    #allocation3 [shape = 'u8[8192]{0}', space=vmem, size = 0x2000, scoped, tag = 'input window, operand 2']
    #allocation4 [shape = 's32[2]{0}', space=sflag, size = 0x8, scoped, tag = 'scoped memory for tpu_custom_call.1']
    #allocation5 [shape = 's32[2]{0}', space=sflag, size = 0x8, scoped, tag = 'scoped memory for tpu_custom_call.1']
    #allocation6 [shape = 'u8[131072]{0}', space=vmem, size = 0x20000, scoped, tag = 'input window, operand 5']
    #allocation7 [shape = 's32[2]{0}', space=sflag, size = 0x8, scoped, tag = 'scoped memory for tpu_custom_call.1']
    #allocation8 [shape = 'u8[131072]{0}', space=vmem, size = 0x20000, scoped, tag = 'input window, operand 6']
    #allocation9 [shape = 'u8[8192]{0}', space=vmem, size = 0x2000, scoped, tag = 'output window, operand 0']
    %15 = vsyncpa [#allocation4], 0
    %s16 = scalar_lea.sflag [#allocation4], 1
    %17 = vsyncpa %s16, 0
    %18 = vsyncpa [#allocation7], 0
    %s19 = scalar_lea.sflag [#allocation7], 1
    %20 = vsyncpa %s19, 0
    %21 = vsyncpa [#allocation5], 0
    %s22 = scalar_lea.sflag [#allocation5], 1
    %23 = vsyncpa %s22, 0
    loop: start=0, step=1, limit=6
    $region2: #{tpu_custom_call.1} parent=1 // loop_pre_header
      _
    $region3: #{tpu_custom_call.1} parent=1 // loop_header
      %s25 = sphi 0, %s29
      %p26 = scmp.ge.s32.totalorder %s25, 6
      %s32 = sphi 0, %s44
      %s33 = sphi 0, %s40
      %s34 = sphi 0, %s32
      %s35 = sphi 0, %s33
      %s36 = sphi 0, %s34
      %s37 = sphi 0, %s35
      %s47 = sphi 0, %s49
      %s50 = sphi 0, %s47
      %s51 = sphi 0, %s50
      %s67 = sphi 0, %s51
      %s73 = sphi 0, %s75
      %s76 = sphi 0, %s73
      %s77 = sphi 0, %s76
      %s93 = sphi 0, %s77
      %s99 = sphi 0, %s101
      %s102 = sphi 0, %s99
      %s103 = sphi 0, %s102
      %s119 = sphi 0, %s103
      %s125 = sphi 0, %s127
      %s128 = sphi 0, %s125
      %s129 = sphi 0, %s128
      %s145 = sphi 0, %s129
      %s153 = sphi 0, %s155
      %s156 = sphi 0, %s153
      %s157 = sphi 0, %s156
      %s173 = sphi 0, %s157
      %s179 = sphi 0, %s181
      %s182 = sphi 0, %s179
      %s183 = sphi 0, %s182
      %s199 = sphi 0, %s183
      %s205 = sphi 0, %s207
      %s208 = sphi 0, %s205
      %s209 = sphi 0, %s208
      %s225 = sphi 0, %s209
      %s231 = sphi 0, %s233
      %s234 = sphi 0, %s231
      %s235 = sphi 0, %s234
      %s251 = sphi 0, %s235
      %s257 = sphi 0, %s259
      %s260 = sphi 0, %s257
      %s261 = sphi 0, %s260
      %s277 = sphi 0, %s261
      %s281 = sphi 0, %s281
      %s283 = sphi 0, %s281
      %s284 = sphi 0, %s283
      %s298 = sphi 0, %s284
      %s304 = sphi 0, %s306
      %s307 = sphi 0, %s304
      %s308 = sphi 0, %s307
      %s324 = sphi 0, %s308
    $region4: #{tpu_custom_call.1} parent=1 // loop_header_branch
      %28 = sbr.rel (%p26) target = $region8
    $region5: #{tpu_custom_call.1} parent=1 // loop_body
      %s30 = ssub.s32 %s25, 1
      %s31 = ssub.s32 %s25, 2
      %s38 = sadd.s32 1, %s33
      %p39 = scmp.ge.s32.totalorder %s38, 2
      %s40 = scalar_select %p39, 0, %s38
      %s41 = sadd.s32 1, %s32
      %s42 = scalar_select %p39, %s41, %s32
      %p43 = scmp.ge.s32.totalorder %s42, 2
      %s44 = scalar_select %p43, 0, %s42
      %s45 = ssub.s32 %s32, %s44
      %p46 = scmp.eq.s32.totalorder %s45, 0
      %s48 = sadd.s32 %s47, 1
      %s49 = scalar_select %p46, %s47, %s48
      %p52 = pneg %p46
      %p53 = scmp.eq.s32.totalorder %s25, 3
      %p54 = por %p52, %p53
      %p55 = scmp.ne.s32.totalorder %s47, %s50
      %p56 = scmp.eq.s32.totalorder %s25, 0
      %p57 = por %p55, %p56
      %p58 = scmp.ne.s32.totalorder %s47, %s50
      %p59 = scmp.eq.s32.totalorder %s30, 3
      %p60 = por %p58, %p59
      %p61 = scmp.ne.s32.totalorder %s50, %s51
      %p62 = scmp.eq.s32.totalorder %s30, 0
      %p63 = por %p61, %p62
      %p64 = scmp.ne.s32.totalorder %s50, %s51
      %p65 = scmp.eq.s32.totalorder %s31, 3
      %p66 = por %p64, %p65
      %p68 = scmp.ne.s32.totalorder %s51, %s67
      %p69 = scmp.eq.s32.totalorder %s31, 0
      %p70 = por %p68, %p69
      %s71 = ssub.s32 %s32, %s44
      %p72 = scmp.eq.s32.totalorder %s71, 0
      %s74 = sadd.s32 %s73, 1
      %s75 = scalar_select %p72, %s73, %s74
      %p78 = pneg %p72
      %p79 = scmp.eq.s32.totalorder %s25, 3
      %p80 = por %p78, %p79
      %p81 = scmp.ne.s32.totalorder %s73, %s76
      %p82 = scmp.eq.s32.totalorder %s25, 0
      %p83 = por %p81, %p82
      %p84 = scmp.ne.s32.totalorder %s73, %s76
      %p85 = scmp.eq.s32.totalorder %s30, 3
      %p86 = por %p84, %p85
      %p87 = scmp.ne.s32.totalorder %s76, %s77
      %p88 = scmp.eq.s32.totalorder %s30, 0
      %p89 = por %p87, %p88
      %p90 = scmp.ne.s32.totalorder %s76, %s77
      %p91 = scmp.eq.s32.totalorder %s31, 3
      %p92 = por %p90, %p91
      %p94 = scmp.ne.s32.totalorder %s77, %s93
      %p95 = scmp.eq.s32.totalorder %s31, 0
      %p96 = por %p94, %p95
      %s97 = ssub.s32 %s32, %s44
      %p98 = scmp.eq.s32.totalorder %s97, 0
      %s100 = sadd.s32 %s99, 1
      %s101 = scalar_select %p98, %s99, %s100
      %p104 = pneg %p98
      %p105 = scmp.eq.s32.totalorder %s25, 3
      %p106 = por %p104, %p105
      %p107 = scmp.ne.s32.totalorder %s99, %s102
      %p108 = scmp.eq.s32.totalorder %s25, 0
      %p109 = por %p107, %p108
      %p110 = scmp.ne.s32.totalorder %s99, %s102
      %p111 = scmp.eq.s32.totalorder %s30, 3
      %p112 = por %p110, %p111
      %p113 = scmp.ne.s32.totalorder %s102, %s103
      %p114 = scmp.eq.s32.totalorder %s30, 0
      %p115 = por %p113, %p114
      %p116 = scmp.ne.s32.totalorder %s102, %s103
      %p117 = scmp.eq.s32.totalorder %s31, 3
      %p118 = por %p116, %p117
      %p120 = scmp.ne.s32.totalorder %s103, %s119
      %p121 = scmp.eq.s32.totalorder %s31, 0
      %p122 = por %p120, %p121
      %s123 = ssub.s32 %s32, %s44
      %p124 = scmp.eq.s32.totalorder %s123, 0
      %s126 = sadd.s32 %s125, 1
      %s127 = scalar_select %p124, %s125, %s126
      %p130 = pneg %p124
      %p131 = scmp.eq.s32.totalorder %s25, 3
      %p132 = por %p130, %p131
      %p133 = scmp.ne.s32.totalorder %s125, %s128
      %p134 = scmp.eq.s32.totalorder %s25, 0
      %p135 = por %p133, %p134
      %p136 = scmp.ne.s32.totalorder %s125, %s128
      %p137 = scmp.eq.s32.totalorder %s30, 3
      %p138 = por %p136, %p137
      %p139 = scmp.ne.s32.totalorder %s128, %s129
      %p140 = scmp.eq.s32.totalorder %s30, 0
      %p141 = por %p139, %p140
      %p142 = scmp.ne.s32.totalorder %s128, %s129
      %p143 = scmp.eq.s32.totalorder %s31, 3
      %p144 = por %p142, %p143
      %p146 = scmp.ne.s32.totalorder %s129, %s145
      %p147 = scmp.eq.s32.totalorder %s31, 0
      %p148 = por %p146, %p147
      %s149 = ssub.s32 %s33, %s40
      %s150 = ssub.s32 %s32, %s44
      %s151 = sor.u32 %s149, %s150
      %p152 = scmp.eq.s32.totalorder %s151, 0
      %s154 = sadd.s32 %s153, 1
      %s155 = scalar_select %p152, %s153, %s154
      %p158 = pneg %p152
      %p159 = scmp.eq.s32.totalorder %s25, 3
      %p160 = por %p158, %p159
      %p161 = scmp.ne.s32.totalorder %s153, %s156
      %p162 = scmp.eq.s32.totalorder %s25, 0
      %p163 = por %p161, %p162
      %p164 = scmp.ne.s32.totalorder %s153, %s156
      %p165 = scmp.eq.s32.totalorder %s30, 3
      %p166 = por %p164, %p165
      %p167 = scmp.ne.s32.totalorder %s156, %s157
      %p168 = scmp.eq.s32.totalorder %s30, 0
      %p169 = por %p167, %p168
      %p170 = scmp.ne.s32.totalorder %s156, %s157
      %p171 = scmp.eq.s32.totalorder %s31, 3
      %p172 = por %p170, %p171
      %p174 = scmp.ne.s32.totalorder %s157, %s173
      %p175 = scmp.eq.s32.totalorder %s31, 0
      %p176 = por %p174, %p175
      %s177 = ssub.s32 %s33, %s40
      %p178 = scmp.eq.s32.totalorder %s177, 0
      %s180 = sadd.s32 %s179, 1
      %s181 = scalar_select %p178, %s179, %s180
      %p184 = pneg %p178
      %p185 = scmp.eq.s32.totalorder %s25, 3
      %p186 = por %p184, %p185
      %p187 = scmp.ne.s32.totalorder %s179, %s182
      %p188 = scmp.eq.s32.totalorder %s25, 0
      %p189 = por %p187, %p188
      %p190 = scmp.ne.s32.totalorder %s179, %s182
      %p191 = scmp.eq.s32.totalorder %s30, 3
      %p192 = por %p190, %p191
      %p193 = scmp.ne.s32.totalorder %s182, %s183
      %p194 = scmp.eq.s32.totalorder %s30, 0
      %p195 = por %p193, %p194
      %p196 = scmp.ne.s32.totalorder %s182, %s183
      %p197 = scmp.eq.s32.totalorder %s31, 3
      %p198 = por %p196, %p197
      %p200 = scmp.ne.s32.totalorder %s183, %s199
      %p201 = scmp.eq.s32.totalorder %s31, 0
      %p202 = por %p200, %p201
      %s203 = ssub.s32 %s33, %s40
      %p204 = scmp.eq.s32.totalorder %s203, 0
      %s206 = sadd.s32 %s205, 1
      %s207 = scalar_select %p204, %s205, %s206
      %p210 = pneg %p204
      %p211 = scmp.eq.s32.totalorder %s25, 3
      %p212 = por %p210, %p211
      %p213 = scmp.ne.s32.totalorder %s205, %s208
      %p214 = scmp.eq.s32.totalorder %s25, 0
      %p215 = por %p213, %p214
      %p216 = scmp.ne.s32.totalorder %s205, %s208
      %p217 = scmp.eq.s32.totalorder %s30, 3
      %p218 = por %p216, %p217
      %p219 = scmp.ne.s32.totalorder %s208, %s209
      %p220 = scmp.eq.s32.totalorder %s30, 0
      %p221 = por %p219, %p220
      %p222 = scmp.ne.s32.totalorder %s208, %s209
      %p223 = scmp.eq.s32.totalorder %s31, 3
      %p224 = por %p222, %p223
      %p226 = scmp.ne.s32.totalorder %s209, %s225
      %p227 = scmp.eq.s32.totalorder %s31, 0
      %p228 = por %p226, %p227
      %s229 = ssub.s32 %s33, %s40
      %p230 = scmp.eq.s32.totalorder %s229, 0
      %s232 = sadd.s32 %s231, 1
      %s233 = scalar_select %p230, %s231, %s232
      %p236 = pneg %p230
      %p237 = scmp.eq.s32.totalorder %s25, 3
      %p238 = por %p236, %p237
      %p239 = scmp.ne.s32.totalorder %s231, %s234
      %p240 = scmp.eq.s32.totalorder %s25, 0
      %p241 = por %p239, %p240
      %p242 = scmp.ne.s32.totalorder %s231, %s234
      %p243 = scmp.eq.s32.totalorder %s30, 3
      %p244 = por %p242, %p243
      %p245 = scmp.ne.s32.totalorder %s234, %s235
      %p246 = scmp.eq.s32.totalorder %s30, 0
      %p247 = por %p245, %p246
      %p248 = scmp.ne.s32.totalorder %s234, %s235
      %p249 = scmp.eq.s32.totalorder %s31, 3
      %p250 = por %p248, %p249
      %p252 = scmp.ne.s32.totalorder %s235, %s251
      %p253 = scmp.eq.s32.totalorder %s31, 0
      %p254 = por %p252, %p253
      %s255 = ssub.s32 %s33, %s40
      %p256 = scmp.eq.s32.totalorder %s255, 0
      %s258 = sadd.s32 %s257, 1
      %s259 = scalar_select %p256, %s257, %s258
      %p262 = pneg %p256
      %p263 = scmp.eq.s32.totalorder %s25, 3
      %p264 = por %p262, %p263
      %p265 = scmp.ne.s32.totalorder %s257, %s260
      %p266 = scmp.eq.s32.totalorder %s25, 0
      %p267 = por %p265, %p266
      %p268 = scmp.ne.s32.totalorder %s257, %s260
      %p269 = scmp.eq.s32.totalorder %s30, 3
      %p270 = por %p268, %p269
      %p271 = scmp.ne.s32.totalorder %s260, %s261
      %p272 = scmp.eq.s32.totalorder %s30, 0
      %p273 = por %p271, %p272
      %p274 = scmp.ne.s32.totalorder %s260, %s261
      %p275 = scmp.eq.s32.totalorder %s31, 3
      %p276 = por %p274, %p275
      %p278 = scmp.ne.s32.totalorder %s261, %s277
      %p279 = scmp.eq.s32.totalorder %s31, 0
      %p280 = por %p278, %p279
      %s282 = sadd.s32 %s281, 1
      %p285 = scmp.eq.s32.totalorder %s25, 3
      %p286 = scmp.ne.s32.totalorder %s281, %s283
      %p287 = scmp.eq.s32.totalorder %s25, 0
      %p288 = por %p286, %p287
      %p289 = scmp.ne.s32.totalorder %s281, %s283
      %p290 = scmp.eq.s32.totalorder %s30, 3
      %p291 = por %p289, %p290
      %p292 = scmp.ne.s32.totalorder %s283, %s284
      %p293 = scmp.eq.s32.totalorder %s30, 0
      %p294 = por %p292, %p293
      %p295 = scmp.ne.s32.totalorder %s283, %s284
      %p296 = scmp.eq.s32.totalorder %s31, 3
      %p297 = por %p295, %p296
      %p299 = scmp.ne.s32.totalorder %s284, %s298
      %p300 = scmp.eq.s32.totalorder %s31, 0
      %p301 = por %p299, %p300
      %s302 = ssub.s32 %s32, %s44
      %p303 = scmp.eq.s32.totalorder %s302, 0
      %s305 = sadd.s32 %s304, 1
      %s306 = scalar_select %p303, %s304, %s305
      %p309 = pneg %p303
      %p310 = scmp.eq.s32.totalorder %s25, 3
      %p311 = por %p309, %p310
      %p312 = scmp.ne.s32.totalorder %s304, %s307
      %p313 = scmp.eq.s32.totalorder %s25, 0
      %p314 = por %p312, %p313
      %p315 = scmp.ne.s32.totalorder %s304, %s307
      %p316 = scmp.eq.s32.totalorder %s30, 3
      %p317 = por %p315, %p316
      %p318 = scmp.ne.s32.totalorder %s307, %s308
      %p319 = scmp.eq.s32.totalorder %s30, 0
      %p320 = por %p318, %p319
      %p321 = scmp.ne.s32.totalorder %s307, %s308
      %p322 = scmp.eq.s32.totalorder %s31, 3
      %p323 = por %p321, %p322
      %p325 = scmp.ne.s32.totalorder %s308, %s324
      %p326 = scmp.eq.s32.totalorder %s31, 0
      %p327 = por %p325, %p326
      %p328 = scmp.le.s32.totalorder 1, %s25
      %p329 = scmp.lt.s32.totalorder %s25, 5
      %p330 = pnand %p328, %p329
      %p331 = pneg %p330
      // Predicated region
      $region9: #{tpu_custom_call.1} parent=5 // pred_check
        _
      $region10: #{tpu_custom_call.1} parent=5 // pred_check_branch
        %333 = sbr.rel (%p330) target = $region12
      $region11: #{tpu_custom_call.1} parent=5 // pred_region
        %s334 = ssub.s32 %s25, 1
        // Predicated region
        $region13: #{tpu_custom_call.1} parent=11 // pred_check
          %p335 = pneg %p294
        $region14: #{tpu_custom_call.1} parent=11 // pred_check_branch
          %337 = sbr.rel (%p335) target = $region16
        $region15: #{tpu_custom_call.1} parent=11 // pred_region
          _
        $region16: #{tpu_custom_call.1} parent=11 // pred_fallthru
          _
      $region12: #{tpu_custom_call.1} parent=5 // pred_fallthru
        _
      %p338 = scmp.lt.s32.totalorder %s25, 4
      // Predicated region
      $region17: #{tpu_custom_call.1} parent=5 // pred_check
        %p339 = pneg %p338
      $region18: #{tpu_custom_call.1} parent=5 // pred_check_branch
        %341 = sbr.rel (%p339) target = $region20
      $region19: #{tpu_custom_call.1} parent=5 // pred_region
        // Predicated region
        $region21: #{tpu_custom_call.1} parent=19 // pred_check
          %p342 = pneg %p57
        $region22: #{tpu_custom_call.1} parent=19 // pred_check_branch
          %344 = sbr.rel (%p342) target = $region24
        $region23: #{tpu_custom_call.1} parent=19 // pred_region
          %p345 = scmp.lt.s32.totalorder %s32, 1
          %s346 = scalar_select %p345, %s32, 1
          %s347 = smul.addr %s346, 8
          %s348 = scalar_lea.vmem %s0, %s347
        $region24: #{tpu_custom_call.1} parent=19 // pred_fallthru
          _
        // Predicated region
        $region25: #{tpu_custom_call.1} parent=19 // pred_check
          %p349 = pneg %p83
        $region26: #{tpu_custom_call.1} parent=19 // pred_check_branch
          %351 = sbr.rel (%p349) target = $region28
        $region27: #{tpu_custom_call.1} parent=19 // pred_region
          %p352 = scmp.lt.s32.totalorder %s32, 1
          %s353 = scalar_select %p352, %s32, 1
          %s354 = smul.addr %s353, 2
          %s355 = smul.addr %s354, 8
          %s356 = scalar_lea.vmem %s1, %s355
        $region28: #{tpu_custom_call.1} parent=19 // pred_fallthru
          _
        // Predicated region
        $region29: #{tpu_custom_call.1} parent=19 // pred_check
          %p357 = pneg %p109
        $region30: #{tpu_custom_call.1} parent=19 // pred_check_branch
          %359 = sbr.rel (%p357) target = $region32
        $region31: #{tpu_custom_call.1} parent=19 // pred_region
          %s360 = sand.u32 %s99, 1
          %s361 = scalar_lea.sflag [#allocation4], %s360
          %s362 = sand.u32 %s99, 1
          %s363 = smul.addr %s362, 8
          %s364 = scalar_lea.vmem [#allocation3], %s363
          %s366 = ssub.s32 128, 128
          %367 = vsyncadd %s361, %s366
          %s368 = smul.addr %s32, 128
          %s369 = scalar_lea.hbm %s2, %s368
          %s371 = sshll.u32 %s364, 4
          %s372 = int_to_ptr.vmem [resolvable:$true] %s371
          %374 = dma.hbm_to_vmem [thread:$0]  %s369, 128, %s372, %s361
        $region32: #{tpu_custom_call.1} parent=19 // pred_fallthru
          _
        // Predicated region
        $region33: #{tpu_custom_call.1} parent=19 // pred_check
          %p375 = pneg %p135
        $region34: #{tpu_custom_call.1} parent=19 // pred_check_branch
          %377 = sbr.rel (%p375) target = $region36
        $region35: #{tpu_custom_call.1} parent=19 // pred_region
          %p378 = scmp.lt.s32.totalorder %s32, 1
          %s379 = scalar_select %p378, %s32, 1
          %s380 = smul.addr %s379, 8
          %s381 = scalar_lea.vmem %s3, %s380
        $region36: #{tpu_custom_call.1} parent=19 // pred_fallthru
          _
        // Predicated region
        $region37: #{tpu_custom_call.1} parent=19 // pred_check
          %p382 = pneg %p163
        $region38: #{tpu_custom_call.1} parent=19 // pred_check_branch
          %384 = sbr.rel (%p382) target = $region40
        $region39: #{tpu_custom_call.1} parent=19 // pred_region
          %p385 = scmp.lt.s32.totalorder %s33, 1
          %s386 = scalar_select %p385, %s33, 1
          %p387 = scmp.lt.s32.totalorder %s32, 1
          %s388 = scalar_select %p387, %s32, 1
          %s389 = smul.addr %s388, 2
          %s390 = smul.addr %s386, 4
          %s391 = sadd.s32 %s389, %s390
          %s392 = smul.addr %s391, 8
          %s393 = scalar_lea.vmem %s4, %s392
        $region40: #{tpu_custom_call.1} parent=19 // pred_fallthru
          _
        // Predicated region
        $region41: #{tpu_custom_call.1} parent=19 // pred_check
          %p394 = pneg %p189
        $region42: #{tpu_custom_call.1} parent=19 // pred_check_branch
          %396 = sbr.rel (%p394) target = $region44
        $region43: #{tpu_custom_call.1} parent=19 // pred_region
          %s397 = sand.u32 %s25, 1
          %s398 = scalar_lea.sflag [#allocation7], %s397
          %s399 = sand.u32 %s179, 1
          %s400 = smul.addr %s399, 128
          %s401 = scalar_lea.vmem [#allocation6], %s400
          %s403 = ssub.s32 2048, 2048
          %404 = vsyncadd %s398, %s403
          %s405 = smul.addr %s33, 16
          %s406 = smul.addr %s405, 128
          %s407 = scalar_lea.hbm %s5, %s406
          %s408 = sshll.u32 %s401, 4
          %s409 = int_to_ptr.vmem [resolvable:$true] %s408
          %414 = dma.hbm_to_vmem [thread:$0]  %s407, 2048, %s409, %s398, 128, 128, 8
        $region44: #{tpu_custom_call.1} parent=19 // pred_fallthru
          _
        // Predicated region
        $region45: #{tpu_custom_call.1} parent=19 // pred_check
          %p415 = pneg %p215
        $region46: #{tpu_custom_call.1} parent=19 // pred_check_branch
          %417 = sbr.rel (%p415) target = $region48
        $region47: #{tpu_custom_call.1} parent=19 // pred_region
          %s418 = sand.u32 %s25, 1
          %s419 = scalar_lea.sflag [#allocation7], %s418
          %s420 = sand.u32 %s205, 1
          %s421 = smul.addr %s420, 128
          %s422 = scalar_lea.vmem [#allocation8], %s421
          %s424 = ssub.s32 2048, 2048
          %425 = vsyncadd %s419, %s424
          %s426 = smul.addr %s33, 16
          %s427 = smul.addr %s426, 128
          %s428 = scalar_lea.hbm %s6, %s427
          %s429 = sshll.u32 %s422, 4
          %s430 = int_to_ptr.vmem [resolvable:$true] %s429
          %435 = dma.hbm_to_vmem [thread:$0]  %s428, 2048, %s430, %s419, 128, 128, 8
        $region48: #{tpu_custom_call.1} parent=19 // pred_fallthru
          _
        // Predicated region
        $region49: #{tpu_custom_call.1} parent=19 // pred_check
          %p436 = pneg %p241
        $region50: #{tpu_custom_call.1} parent=19 // pred_check_branch
          %438 = sbr.rel (%p436) target = $region52
        $region51: #{tpu_custom_call.1} parent=19 // pred_region
          %p439 = scmp.lt.s32.totalorder %s33, 1
          %s440 = scalar_select %p439, %s33, 1
          %s441 = scalar_lea.vmem %s7, %s440
        $region52: #{tpu_custom_call.1} parent=19 // pred_fallthru
          _
        // Predicated region
        $region53: #{tpu_custom_call.1} parent=19 // pred_check
          %p442 = pneg %p267
        $region54: #{tpu_custom_call.1} parent=19 // pred_check_branch
          %444 = sbr.rel (%p442) target = $region56
        $region55: #{tpu_custom_call.1} parent=19 // pred_region
          %p445 = scmp.lt.s32.totalorder %s33, 1
          %s446 = scalar_select %p445, %s33, 1
          %s447 = scalar_lea.vmem %s8, %s446
        $region56: #{tpu_custom_call.1} parent=19 // pred_fallthru
          _
      $region20: #{tpu_custom_call.1} parent=5 // pred_fallthru
        _
      %p448 = scmp.le.s32.totalorder 1, %s25
      %p449 = scmp.lt.s32.totalorder %s25, 5
      %p450 = pnand %p448, %p449
      %p451 = pneg %p450
      // Predicated region
      $region57: #{tpu_custom_call.1} parent=5 // pred_check
        _
      $region58: #{tpu_custom_call.1} parent=5 // pred_check_branch
        %453 = sbr.rel (%p450) target = $region60
      $region59: #{tpu_custom_call.1} parent=5 // pred_region
        %s454 = ssub.s32 %s25, 1
        %s455 = sand.u32 %s102, 1
        %s456 = scalar_lea.sflag [#allocation4], %s455
        %s457 = sand.u32 %s102, 1
        %s458 = smul.addr %s457, 8
        %s459 = scalar_lea.vmem [#allocation3], %s458
        // Predicated region
        $region61: #{tpu_custom_call.1} parent=59 // pred_check
          %p460 = pneg %p115
        $region62: #{tpu_custom_call.1} parent=59 // pred_check_branch
          %462 = sbr.rel (%p460) target = $region64
        $region63: #{tpu_custom_call.1} parent=59 // pred_region
          %463 = dma.done %s456, 128
        $region64: #{tpu_custom_call.1} parent=59 // pred_fallthru
          _
        %s464 = sand.u32 %s30, 1
        %s465 = scalar_lea.sflag [#allocation7], %s464
        %s466 = sand.u32 %s182, 1
        %s467 = smul.addr %s466, 128
        %s468 = scalar_lea.vmem [#allocation6], %s467
        // Predicated region
        $region65: #{tpu_custom_call.1} parent=59 // pred_check
          %p469 = pneg %p195
        $region66: #{tpu_custom_call.1} parent=59 // pred_check_branch
          %471 = sbr.rel (%p469) target = $region68
        $region67: #{tpu_custom_call.1} parent=59 // pred_region
          %472 = dma.done %s465, 2048
        $region68: #{tpu_custom_call.1} parent=59 // pred_fallthru
          _
        %s473 = sand.u32 %s30, 1
        %s474 = scalar_lea.sflag [#allocation7], %s473
        %s475 = sand.u32 %s208, 1
        %s476 = smul.addr %s475, 128
        %s477 = scalar_lea.vmem [#allocation8], %s476
        // Predicated region
        $region69: #{tpu_custom_call.1} parent=59 // pred_check
          %p478 = pneg %p221
        $region70: #{tpu_custom_call.1} parent=59 // pred_check_branch
          %480 = sbr.rel (%p478) target = $region72
        $region71: #{tpu_custom_call.1} parent=59 // pred_region
          %481 = dma.done %s474, 2048
        $region72: #{tpu_custom_call.1} parent=59 // pred_fallthru
          _
        %p482 = scmp.lt.s32.totalorder %s34, 1
        %s483 = scalar_select %p482, %s34, 1
        %s484 = smul.addr %s483, 8
        %s485 = scalar_lea.vmem %s0, %s484
        %p486 = pneg %p63
        %p487 = pneg %p60
        %p488 = scmp.lt.s32.totalorder %s34, 1
        %s489 = scalar_select %p488, %s34, 1
        %s490 = smul.addr %s489, 2
        %s491 = smul.addr %s490, 8
        %s492 = scalar_lea.vmem %s1, %s491
        %p493 = pneg %p89
        %p494 = pneg %p86
        %s495 = sand.u32 %s102, 1
        %s496 = scalar_lea.sflag [#allocation4], %s495
        %s497 = sand.u32 %s102, 1
        %s498 = smul.addr %s497, 8
        %s499 = scalar_lea.vmem [#allocation3], %s498
        %p500 = pneg %p115
        %p501 = pneg %p112
        %p502 = scmp.lt.s32.totalorder %s34, 1
        %s503 = scalar_select %p502, %s34, 1
        %s504 = smul.addr %s503, 8
        %s505 = scalar_lea.vmem %s3, %s504
        %p506 = pneg %p141
        %p507 = pneg %p138
        %p508 = scmp.lt.s32.totalorder %s35, 1
        %s509 = scalar_select %p508, %s35, 1
        %p510 = scmp.lt.s32.totalorder %s34, 1
        %s511 = scalar_select %p510, %s34, 1
        %s512 = smul.addr %s511, 2
        %s513 = smul.addr %s509, 4
        %s514 = sadd.s32 %s512, %s513
        %s515 = smul.addr %s514, 8
        %s516 = scalar_lea.vmem %s4, %s515
        %p517 = pneg %p169
        %p518 = pneg %p166
        %s519 = sand.u32 %s30, 1
        %s520 = scalar_lea.sflag [#allocation7], %s519
        %s521 = sand.u32 %s182, 1
        %s522 = smul.addr %s521, 128
        %s523 = scalar_lea.vmem [#allocation6], %s522
        %p524 = pneg %p195
        %p525 = pneg %p192
        %s526 = sand.u32 %s30, 1
        %s527 = scalar_lea.sflag [#allocation7], %s526
        %s528 = sand.u32 %s208, 1
        %s529 = smul.addr %s528, 128
        %s530 = scalar_lea.vmem [#allocation8], %s529
        %p531 = pneg %p221
        %p532 = pneg %p218
        %p533 = scmp.lt.s32.totalorder %s35, 1
        %s534 = scalar_select %p533, %s35, 1
        %s535 = scalar_lea.vmem %s7, %s534
        %p536 = pneg %p247
        %p537 = pneg %p244
        %p538 = scmp.lt.s32.totalorder %s35, 1
        %s539 = scalar_select %p538, %s35, 1
        %s540 = scalar_lea.vmem %s8, %s539
        %p541 = pneg %p273
        %p542 = pneg %p270
        %p543 = pneg %p294
        %p544 = pneg %p291
        %p545 = pneg %p320
        %p546 = pneg %p317
        %s547 = sand.u32 %s307, 1
        %s548 = scalar_lea.sflag [#allocation5], %s547
        %s549 = sand.u32 %s307, 1
        %s550 = smul.addr %s549, 8
        %s551 = scalar_lea.vmem [#allocation9], %s550
        %p552 = scmp.lt.s32.totalorder %s34, 1
        %s553 = scalar_select %p552, %s34, 1
        %s554 = smul.addr %s553, 8
        %s555 = scalar_lea.vmem %s0, %s554
        %p556 = scmp.lt.s32.totalorder %s34, 1
        %s557 = scalar_select %p556, %s34, 1
        %s558 = smul.addr %s557, 2
        %s559 = smul.addr %s558, 8
        %s560 = scalar_lea.vmem %s1, %s559
        %p561 = scmp.lt.s32.totalorder %s34, 1
        %s562 = scalar_select %p561, %s34, 1
        %s563 = smul.addr %s562, 8
        %s564 = scalar_lea.vmem %s3, %s563
        %p565 = scmp.lt.s32.totalorder %s35, 1
        %s566 = scalar_select %p565, %s35, 1
        %p567 = scmp.lt.s32.totalorder %s34, 1
        %s568 = scalar_select %p567, %s34, 1
        %s569 = smul.addr %s568, 2
        %s570 = smul.addr %s566, 4
        %s571 = sadd.s32 %s569, %s570
        %s572 = smul.addr %s571, 8
        %s573 = scalar_lea.vmem %s4, %s572
        %p574 = scmp.lt.s32.totalorder %s35, 1
        %s575 = scalar_select %p574, %s35, 1
        %s576 = scalar_lea.vmem %s7, %s575
        %p577 = scmp.lt.s32.totalorder %s35, 1
        %s578 = scalar_select %p577, %s35, 1
        %s579 = scalar_lea.vmem %s8, %s578
        %p580 = scmp.eq.s32.totalorder %s35, 0
        // Predicated region
        $region73: #{tpu_custom_call.1} parent=59 // pred_check
          %p581 = pneg %p580
        $region74: #{tpu_custom_call.1} parent=59 // pred_check_branch
          %583 = sbr.rel (%p581) target = $region76
        $region75: #{tpu_custom_call.1} parent=59 // pred_region
          %v584 = vld [vmem:[%s555] sm:$0xff]
          %585 = vst [vmem:[#allocation2] sm:$0xff] %v584
        $region76: #{tpu_custom_call.1} parent=59 // pred_fallthru
          _
        %v586 = vld [vmem:[%s468] sm:$0xff]
        %v587 = vld [vmem:[%s468 + $0x8] sm:$0xff]
        %v588 = vld [vmem:[%s468 + $0x10] sm:$0xff]
        %v589 = vld [vmem:[%s468 + $0x18] sm:$0xff]
        %v590 = vld [vmem:[%s468 + $0x20] sm:$0xff]
        %v591 = vld [vmem:[%s468 + $0x28] sm:$0xff]
        %v592 = vld [vmem:[%s468 + $0x30] sm:$0xff]
        %v593 = vld [vmem:[%s468 + $0x38] sm:$0xff]
        %v594 = vld [vmem:[%s468 + $0x40] sm:$0xff]
        %v595 = vld [vmem:[%s468 + $0x48] sm:$0xff]
        %v596 = vld [vmem:[%s468 + $0x50] sm:$0xff]
        %v597 = vld [vmem:[%s468 + $0x58] sm:$0xff]
        %v598 = vld [vmem:[%s468 + $0x60] sm:$0xff]
        %v599 = vld [vmem:[%s468 + $0x68] sm:$0xff]
        %v600 = vld [vmem:[%s468 + $0x70] sm:$0xff]
        %v601 = vld [vmem:[%s468 + $0x78] sm:$0xff]
        %v602 = vld [vmem:[%s477] sm:$0xff]
        %v603 = vld [vmem:[%s477 + $0x8] sm:$0xff]
        %v604 = vld [vmem:[%s477 + $0x10] sm:$0xff]
        %v605 = vld [vmem:[%s477 + $0x18] sm:$0xff]
        %v606 = vld [vmem:[%s477 + $0x20] sm:$0xff]
        %v607 = vld [vmem:[%s477 + $0x28] sm:$0xff]
        %v608 = vld [vmem:[%s477 + $0x30] sm:$0xff]
        %v609 = vld [vmem:[%s477 + $0x38] sm:$0xff]
        %v610 = vld [vmem:[%s477 + $0x40] sm:$0xff]
        %v611 = vld [vmem:[%s477 + $0x48] sm:$0xff]
        %v612 = vld [vmem:[%s477 + $0x50] sm:$0xff]
        %v613 = vld [vmem:[%s477 + $0x58] sm:$0xff]
        %v614 = vld [vmem:[%s477 + $0x60] sm:$0xff]
        %v615 = vld [vmem:[%s477 + $0x68] sm:$0xff]
        %v616 = vld [vmem:[%s477 + $0x70] sm:$0xff]
        %v617 = vld [vmem:[%s477 + $0x78] sm:$0xff]
        %v618 = vld [vmem:[%s576] sm:$0x1]
        %v619 = vld [vmem:[%s579] sm:$0x1]
        %v620 = vld [vmem:[%s9] sm:$0x1]
        %v621 = vld [vmem:[#allocation2] sm:$0xff]
        %622 = vmatprep.subr.mxu0 0.0
        %623 = vmatpush1.msra.mxu0 %v586
        %624 = vmatprep.subr.mxu0 0.0
        %625 = vmatpush1.msra.mxu0 %v587
        %626 = vmatprep.subr.mxu0 0.0
        %627 = vmatpush1.msra.mxu0 %v588
        %628 = vmatprep.subr.mxu0 0.0
        %629 = vmatpush1.msra.mxu0 %v589
        %630 = vmatprep.subr.mxu0 0.0
        %631 = vmatpush1.msra.mxu0 %v590
        %632 = vmatprep.subr.mxu0 0.0
        %633 = vmatpush1.msra.mxu0 %v591
        %634 = vmatprep.subr.mxu0 0.0
        %635 = vmatpush1.msra.mxu0 %v592
        %636 = vmatprep.subr.mxu0 0.0
        %637 = vmatpush1.msra.mxu0 %v593
        %638 = vmatprep.subr.mxu0 0.0
        %639 = vmatpush1.msra.mxu0 %v594
        %640 = vmatprep.subr.mxu0 0.0
        %641 = vmatpush1.msra.mxu0 %v595
        %642 = vmatprep.subr.mxu0 0.0
        %643 = vmatpush1.msra.mxu0 %v596
        %644 = vmatprep.subr.mxu0 0.0
        %645 = vmatpush1.msra.mxu0 %v597
        %646 = vmatprep.subr.mxu0 0.0
        %647 = vmatpush1.msra.mxu0 %v598
        %648 = vmatprep.subr.mxu0 0.0
        %649 = vmatpush1.msra.mxu0 %v599
        %650 = vmatprep.subr.mxu0 0.0
        %651 = vmatpush1.msra.mxu0 %v600
        %652 = vmatprep.subr.mxu0 0.0
        %653 = vmatpush1.msra.mxu0 %v601
        %654 = vmatprep.subr.mxu0 0.0
        %655 = vmatpush1.msra.mxu0 0.0
        %656 = vmatprep.subr.mxu0 0.0
        %657 = vmatpush1.msra.mxu0 0.0
        %658 = vmatprep.subr.mxu0 0.0
        %659 = vmatpush1.msra.mxu0 0.0
        %660 = vmatprep.subr.mxu0 0.0
        %661 = vmatpush1.msra.mxu0 0.0
        %662 = vmatprep.subr.mxu0 0.0
        %663 = vmatpush1.msra.mxu0 0.0
        %664 = vmatprep.subr.mxu0 0.0
        %665 = vmatpush1.msra.mxu0 0.0
        %666 = vmatprep.subr.mxu0 0.0
        %667 = vmatpush1.msra.mxu0 0.0
        %668 = vmatprep.subr.mxu0 0.0
        %669 = vmatpush1.msra.mxu0 0.0
        %670 = vmatprep.subr.mxu0 0.0
        %671 = vmatpush1.msra.mxu0 0.0
        %672 = vmatprep.subr.mxu0 0.0
        %673 = vmatpush1.msra.mxu0 0.0
        %674 = vmatprep.subr.mxu0 0.0
        %675 = vmatpush1.msra.mxu0 0.0
        %676 = vmatprep.subr.mxu0 0.0
        %677 = vmatpush1.msra.mxu0 0.0
        %678 = vmatprep.subr.mxu0 0.0
        %679 = vmatpush1.msra.mxu0 0.0
        %680 = vmatprep.subr.mxu0 0.0
        %681 = vmatpush1.msra.mxu0 0.0
        %682 = vmatprep.subr.mxu0 0.0
        %683 = vmatpush1.msra.mxu0 0.0
        %684 = vmatprep.subr.mxu0 0.0
        %685 = vmatpush1.msra.mxu0 0.0
        %686 = vmatprep.mubr.f32.mxu0 0.0
        %687 = vmatmul.mubr.f32.gmra.mrb[0].mxu0 %v621
        %v688 = vpop.f32.mrb[0].mxu0
        %v689 = vadd.f32 0.0, %v688
        %v690 = vpop.f32.mrb[0].mxu0
        %691 = vdwg.mxu0
        %v692 = vld [vmem:[%s560] sm:$0xff]
        %v693 = vld [vmem:[%s560 + $0x8] sm:$0xff]
        %vm694 = vcmask 64512
        %v696 = vsel %vm694, %v692, 0
        %v699 = vsel %vm694, %v693, 0
        %701 = vmatprep.subr.mxu0 0.0
        %702 = vmatpush1.msra.mxu0 %v689
        %703 = vmatprep.subr.mxu0 0.0
        %704 = vmatpush1.msra.mxu0 0.0
        %705 = vmatprep.subr.mxu0 0.0
        %706 = vmatpush1.msra.mxu0 0.0
        %707 = vmatprep.subr.mxu0 0.0
        %708 = vmatpush1.msra.mxu0 0.0
        %709 = vmatprep.subr.mxu0 0.0
        %710 = vmatpush1.msra.mxu0 0.0
        %711 = vmatprep.subr.mxu0 0.0
        %712 = vmatpush1.msra.mxu0 0.0
        %713 = vmatprep.subr.mxu0 0.0
        %714 = vmatpush1.msra.mxu0 0.0
        %715 = vmatprep.subr.mxu0 0.0
        %716 = vmatpush1.msra.mxu0 0.0
        %717 = vmatprep.subr.mxu0 0.0
        %718 = vmatpush1.msra.mxu0 0.0
        %719 = vmatprep.subr.mxu0 0.0
        %720 = vmatpush1.msra.mxu0 0.0
        %721 = vmatprep.subr.mxu0 0.0
        %722 = vmatpush1.msra.mxu0 0.0
        %723 = vmatprep.subr.mxu0 0.0
        %724 = vmatpush1.msra.mxu0 0.0
        %725 = vmatprep.subr.mxu0 0.0
        %726 = vmatpush1.msra.mxu0 0.0
        %727 = vmatprep.subr.mxu0 0.0
        %728 = vmatpush1.msra.mxu0 0.0
        %729 = vmatprep.subr.mxu0 0.0
        %730 = vmatpush1.msra.mxu0 0.0
        %731 = vmatprep.subr.mxu0 0.0
        %732 = vmatpush1.msra.mxu0 0.0
        %733 = vmatprep.subr.mxu0 0.0
        %734 = vmatpush1.msra.mxu0 0.0
        %735 = vmatprep.subr.mxu0 0.0
        %736 = vmatpush1.msra.mxu0 0.0
        %737 = vmatprep.subr.mxu0 0.0
        %738 = vmatpush1.msra.mxu0 0.0
        %739 = vmatprep.subr.mxu0 0.0
        %740 = vmatpush1.msra.mxu0 0.0
        %741 = vmatprep.subr.mxu0 0.0
        %742 = vmatpush1.msra.mxu0 0.0
        %743 = vmatprep.subr.mxu0 0.0
        %744 = vmatpush1.msra.mxu0 0.0
        %745 = vmatprep.subr.mxu0 0.0
        %746 = vmatpush1.msra.mxu0 0.0
        %747 = vmatprep.subr.mxu0 0.0
        %748 = vmatpush1.msra.mxu0 0.0
        %749 = vmatprep.subr.mxu0 0.0
        %750 = vmatpush1.msra.mxu0 0.0
        %751 = vmatprep.subr.mxu0 0.0
        %752 = vmatpush1.msra.mxu0 0.0
        %753 = vmatprep.subr.mxu0 0.0
        %754 = vmatpush1.msra.mxu0 0.0
        %755 = vmatprep.subr.mxu0 0.0
        %756 = vmatpush1.msra.mxu0 0.0
        %757 = vmatprep.subr.mxu0 0.0
        %758 = vmatpush1.msra.mxu0 0.0
        %759 = vmatprep.subr.mxu0 0.0
        %760 = vmatpush1.msra.mxu0 0.0
        %761 = vmatprep.subr.mxu0 0.0
        %762 = vmatpush1.msra.mxu0 0.0
        %763 = vmatprep.subr.mxu0 0.0
        %764 = vmatpush1.msra.mxu0 0.0
        %765 = vmatprep.mubr.f32.mxu0 0.0
        %766 = vmatmul.mubr.f32.gmra.mrb[0].mxu0 %v696
        %v767 = vpop.f32.mrb[0].mxu0
        %v768 = vadd.f32 0.0, %v767
        %v769 = vpop.f32.mrb[0].mxu0
        %770 = vmatprep.mubr.f32.mxu0 0.0
        %771 = vmatmul.mubr.f32.gmra.mrb[0].mxu0 %v699
        %v772 = vpop.f32.mrb[0].mxu0
        %v773 = vadd.f32 0.0, %v772
        %v774 = vpop.f32.mrb[0].mxu0
        %775 = vdwg.mxu0
        %v776 = vmax.f32 %v768, 0.0
        %v777 = vmax.f32 %v773, 0.0
        %v778 = vld [vmem:[%s573] sm:$0xff]
        %v779 = vld [vmem:[%s573 + $0x8] sm:$0xff]
        %780 = vmatprep.subr.mxu0 0.0
        %781 = vmatpush1.msra.mxu0 %v602
        %782 = vmatprep.subr.mxu0 0.0
        %783 = vmatpush1.msra.mxu0 %v603
        %784 = vmatprep.subr.mxu0 0.0
        %785 = vmatpush1.msra.mxu0 %v604
        %786 = vmatprep.subr.mxu0 0.0
        %787 = vmatpush1.msra.mxu0 %v605
        %788 = vmatprep.subr.mxu0 0.0
        %789 = vmatpush1.msra.mxu0 %v606
        %790 = vmatprep.subr.mxu0 0.0
        %791 = vmatpush1.msra.mxu0 %v607
        %792 = vmatprep.subr.mxu0 0.0
        %793 = vmatpush1.msra.mxu0 %v608
        %794 = vmatprep.subr.mxu0 0.0
        %795 = vmatpush1.msra.mxu0 %v609
        %796 = vmatprep.subr.mxu0 0.0
        %797 = vmatpush1.msra.mxu0 %v610
        %798 = vmatprep.subr.mxu0 0.0
        %799 = vmatpush1.msra.mxu0 %v611
        %800 = vmatprep.subr.mxu0 0.0
        %801 = vmatpush1.msra.mxu0 %v612
        %802 = vmatprep.subr.mxu0 0.0
        %803 = vmatpush1.msra.mxu0 %v613
        %804 = vmatprep.subr.mxu0 0.0
        %805 = vmatpush1.msra.mxu0 %v614
        %806 = vmatprep.subr.mxu0 0.0
        %807 = vmatpush1.msra.mxu0 %v615
        %808 = vmatprep.subr.mxu0 0.0
        %809 = vmatpush1.msra.mxu0 %v616
        %810 = vmatprep.subr.mxu0 0.0
        %811 = vmatpush1.msra.mxu0 %v617
        %812 = vmatprep.subr.mxu0 0.0
        %813 = vmatpush1.msra.mxu0 0.0
        %814 = vmatprep.subr.mxu0 0.0
        %815 = vmatpush1.msra.mxu0 0.0
        %816 = vmatprep.subr.mxu0 0.0
        %817 = vmatpush1.msra.mxu0 0.0
        %818 = vmatprep.subr.mxu0 0.0
        %819 = vmatpush1.msra.mxu0 0.0
        %820 = vmatprep.subr.mxu0 0.0
        %821 = vmatpush1.msra.mxu0 0.0
        %822 = vmatprep.subr.mxu0 0.0
        %823 = vmatpush1.msra.mxu0 0.0
        %824 = vmatprep.subr.mxu0 0.0
        %825 = vmatpush1.msra.mxu0 0.0
        %826 = vmatprep.subr.mxu0 0.0
        %827 = vmatpush1.msra.mxu0 0.0
        %828 = vmatprep.subr.mxu0 0.0
        %829 = vmatpush1.msra.mxu0 0.0
        %830 = vmatprep.subr.mxu0 0.0
        %831 = vmatpush1.msra.mxu0 0.0
        %832 = vmatprep.subr.mxu0 0.0
        %833 = vmatpush1.msra.mxu0 0.0
        %834 = vmatprep.subr.mxu0 0.0
        %835 = vmatpush1.msra.mxu0 0.0
        %836 = vmatprep.subr.mxu0 0.0
        %837 = vmatpush1.msra.mxu0 0.0
        %838 = vmatprep.subr.mxu0 0.0
        %839 = vmatpush1.msra.mxu0 0.0
        %840 = vmatprep.subr.mxu0 0.0
        %841 = vmatpush1.msra.mxu0 0.0
        %842 = vmatprep.subr.mxu0 0.0
        %843 = vmatpush1.msra.mxu0 0.0
        %844 = vmatprep.mubr.f32.mxu0 0.0
        %845 = vmatmul.mubr.f32.gmra.mrb[0].mxu0 %v776
        %v846 = vpop.f32.mrb[0].mxu0
        %v847 = vadd.f32 %v778, %v846
        %v848 = vpop.f32.mrb[0].mxu0
        %849 = vmatprep.mubr.f32.mxu0 0.0
        %850 = vmatmul.mubr.f32.gmra.mrb[0].mxu0 %v777
        %v851 = vpop.f32.mrb[0].mxu0
        %v852 = vadd.f32 %v779, %v851
        %v853 = vpop.f32.mrb[0].mxu0
        %854 = vdwg.mxu0
        %v855 = vld [vmem:[%s459] sm:$0xff]
        %vm856 = vcmask 130048
        %v858 = vsel %vm856, %v855, 0
        %860 = vmatprep.subr.mxu0 0.0
        %861 = vmatpush1.msra.mxu0 %v847
        %862 = vmatprep.subr.mxu0 0.0
        %863 = vmatpush1.msra.mxu0 %v852
        %864 = vmatprep.subr.mxu0 0.0
        %865 = vmatpush1.msra.mxu0 0.0
        %866 = vmatprep.subr.mxu0 0.0
        %867 = vmatpush1.msra.mxu0 0.0
        %868 = vmatprep.subr.mxu0 0.0
        %869 = vmatpush1.msra.mxu0 0.0
        %870 = vmatprep.subr.mxu0 0.0
        %871 = vmatpush1.msra.mxu0 0.0
        %872 = vmatprep.subr.mxu0 0.0
        %873 = vmatpush1.msra.mxu0 0.0
        %874 = vmatprep.subr.mxu0 0.0
        %875 = vmatpush1.msra.mxu0 0.0
        %876 = vmatprep.subr.mxu0 0.0
        %877 = vmatpush1.msra.mxu0 0.0
        %878 = vmatprep.subr.mxu0 0.0
        %879 = vmatpush1.msra.mxu0 0.0
        %880 = vmatprep.subr.mxu0 0.0
        %881 = vmatpush1.msra.mxu0 0.0
        %882 = vmatprep.subr.mxu0 0.0
        %883 = vmatpush1.msra.mxu0 0.0
        %884 = vmatprep.subr.mxu0 0.0
        %885 = vmatpush1.msra.mxu0 0.0
        %886 = vmatprep.subr.mxu0 0.0
        %887 = vmatpush1.msra.mxu0 0.0
        %888 = vmatprep.subr.mxu0 0.0
        %889 = vmatpush1.msra.mxu0 0.0
        %890 = vmatprep.subr.mxu0 0.0
        %891 = vmatpush1.msra.mxu0 0.0
        %892 = vmatprep.subr.mxu0 0.0
        %893 = vmatpush1.msra.mxu0 0.0
        %894 = vmatprep.subr.mxu0 0.0
        %895 = vmatpush1.msra.mxu0 0.0
        %896 = vmatprep.subr.mxu0 0.0
        %897 = vmatpush1.msra.mxu0 0.0
        %898 = vmatprep.subr.mxu0 0.0
        %899 = vmatpush1.msra.mxu0 0.0
        %900 = vmatprep.subr.mxu0 0.0
        %901 = vmatpush1.msra.mxu0 0.0
        %902 = vmatprep.subr.mxu0 0.0
        %903 = vmatpush1.msra.mxu0 0.0
        %904 = vmatprep.subr.mxu0 0.0
        %905 = vmatpush1.msra.mxu0 0.0
        %906 = vmatprep.subr.mxu0 0.0
        %907 = vmatpush1.msra.mxu0 0.0
        %908 = vmatprep.subr.mxu0 0.0
        %909 = vmatpush1.msra.mxu0 0.0
        %910 = vmatprep.subr.mxu0 0.0
        %911 = vmatpush1.msra.mxu0 0.0
        %912 = vmatprep.subr.mxu0 0.0
        %913 = vmatpush1.msra.mxu0 0.0
        %914 = vmatprep.subr.mxu0 0.0
        %915 = vmatpush1.msra.mxu0 0.0
        %916 = vmatprep.subr.mxu0 0.0
        %917 = vmatpush1.msra.mxu0 0.0
        %918 = vmatprep.subr.mxu0 0.0
        %919 = vmatpush1.msra.mxu0 0.0
        %920 = vmatprep.subr.mxu0 0.0
        %921 = vmatpush1.msra.mxu0 0.0
        %922 = vmatprep.subr.mxu0 0.0
        %923 = vmatpush1.msra.mxu0 0.0
        %924 = vmatprep.mubr.f32.mxu0 0.0
        %925 = vmatmul.mubr.f32.gmra.mrb[0].mxu0 %v858
        %v926 = vpop.f32.mrb[0].mxu0
        %v927 = vadd.f32 0.0, %v926
        %v928 = vpop.f32.mrb[0].mxu0
        %929 = vdwg.mxu0
        %v930 = vmax.f32 %v927, 0.0
        %931 = vadd.xlane.f32.xlu0 %v930
        %v932 = vpop.xlane.xlu0 %931
        %v933 = vmul.f32 %v932, 0.03125
        %v934 = vsub.f32 %v930, %v933
        %v936 = vlaneseq
        %v937 = vshrl.u32 %v936, 7
        %v938 = vsub.s32 0, %v937
        %v939 = vrot.slane %v620, %v938
        %v941 = vmul.f32 %v934, %v939
        %v942 = vmul.f32 %v941, %v941
        %943 = vadd.xlane.f32.xlu0 %v942
        %v944 = vpop.xlane.xlu0 %943
        %v945 = vmul.f32 %v944, 0.03125
        %v946 = vadd.f32 %v945, 1e-05
        %v947 = vrsqrt.pop %v946
        %v948 = vmul.f32 %v941, %v947
        %v950 = vlaneseq
        %v951 = vshrl.u32 %v950, 7
        %v952 = vsub.s32 0, %v951
        %v953 = vrot.slane %v618, %v952
        %v955 = vmul.f32 %v948, %v953
        %v957 = vlaneseq
        %v958 = vshrl.u32 %v957, 7
        %v959 = vsub.s32 0, %v958
        %v960 = vrot.slane %v619, %v959
        %v962 = vadd.f32 %v955, %v960
        %v963 = vld [vmem:[%s564] sm:$0xff]
        %965 = vset.pattern.permute.xlu0 0
        %966 = vperm.xlu0 %965, %v963
        %v967 = vpop.permute.xlu0 %966
        %v969 = vmul.f32 %v962, %v967
        %v970 = vadd.f32 %v969, %v621
        %971 = vst [vmem:[#allocation2] sm:$0xff] %v970
        %p972 = scmp.eq.s32.totalorder %s35, 1
        // Predicated region
        $region77: #{tpu_custom_call.1} parent=59 // pred_check
          %p973 = pneg %p972
        $region78: #{tpu_custom_call.1} parent=59 // pred_check_branch
          %975 = sbr.rel (%p973) target = $region80
        $region79: #{tpu_custom_call.1} parent=59 // pred_region
          %v976 = vld [vmem:[#allocation2] sm:$0xff]
          %977 = vst [vmem:[%s551] sm:$0xff] %v976
        $region80: #{tpu_custom_call.1} parent=59 // pred_fallthru
          _
        %s978 = sand.u32 %s307, 1
        %s979 = scalar_lea.sflag [#allocation5], %s978
        %s980 = sand.u32 %s307, 1
        %s981 = smul.addr %s980, 8
        %s982 = scalar_lea.vmem [#allocation9], %s981
        // Predicated region
        $region81: #{tpu_custom_call.1} parent=59 // pred_check
          %p983 = pneg %p317
        $region82: #{tpu_custom_call.1} parent=59 // pred_check_branch
          %985 = sbr.rel (%p983) target = $region84
        $region83: #{tpu_custom_call.1} parent=59 // pred_region
          %s987 = ssub.s32 128, 128
          %988 = vsyncadd %s979, %s987
          %s989 = smul.addr %s34, 128
          %s990 = scalar_lea.hbm %s10, %s989
          %s992 = sshll.u32 %s982, 4
          %s993 = int_to_ptr.vmem [resolvable:$true] %s992
          %995 = dma.vmem_to_hbm [thread:$0]  %s993, 128, %s990, %s979
        $region84: #{tpu_custom_call.1} parent=59 // pred_fallthru
          _
      $region60: #{tpu_custom_call.1} parent=5 // pred_fallthru
        _
      %p996 = scmp.le.s32.totalorder 2, %s25
      // Predicated region
      $region85: #{tpu_custom_call.1} parent=5 // pred_check
        %p997 = pneg %p996
      $region86: #{tpu_custom_call.1} parent=5 // pred_check_branch
        %999 = sbr.rel (%p997) target = $region88
      $region87: #{tpu_custom_call.1} parent=5 // pred_region
        %s1000 = ssub.s32 %s25, 2
        // Predicated region
        $region89: #{tpu_custom_call.1} parent=87 // pred_check
          %p1001 = pneg %p323
        $region90: #{tpu_custom_call.1} parent=87 // pred_check_branch
          %1003 = sbr.rel (%p1001) target = $region92
        $region91: #{tpu_custom_call.1} parent=87 // pred_region
          %s1004 = sand.u32 %s308, 1
          %s1005 = scalar_lea.sflag [#allocation5], %s1004
          %s1006 = sand.u32 %s308, 1
          %s1007 = smul.addr %s1006, 8
          %s1008 = scalar_lea.vmem [#allocation9], %s1007
          %1009 = dma.done %s1005, 128
        $region92: #{tpu_custom_call.1} parent=87 // pred_fallthru
          _
      $region88: #{tpu_custom_call.1} parent=5 // pred_fallthru
        _
    $region6: #{tpu_custom_call.1} parent=1 // loop_footer
      %s29 = sadd.s32 1, %s25
    $region7: #{tpu_custom_call.1} parent=1 // loop_footer_branch
      %24 = sbr.rel target = $region3
    $region8: #{tpu_custom_call.1} parent=1 // loop_exit
      _
    %1010 = vsyncpa [#allocation4], 1
    %s1011 = scalar_lea.sflag [#allocation4], 1
    %1012 = vsyncpa %s1011, 1
    %1013 = vsyncpa [#allocation7], 1
    %s1014 = scalar_lea.sflag [#allocation7], 1
    %1015 = vsyncpa %s1014, 1
    %1016 = vsyncpa [#allocation5], 1
    %s1017 = scalar_lea.sflag [#allocation5], 1
    %1018 = vsyncpa %s1017, 1

</llo_original>
